<compile_context>
chip_gen: v5e
topology: v5e:2x2
jax: 0.10.0
libtpu: 0.0.40
codegen_flags: <defaults>
</compile_context>

<pallas_src>
import functools

import jax
import jax.numpy as jnp
from jax.experimental import pallas as pl
from jax.experimental.pallas import tpu as pltpu


def _round_up(a, b):
    return (a + b - 1) // b * b


def _fused_mlp_kernel(*refs, num_layers, relu_last):
    """One grid step = one batch (M) tile pushed through ALL layers.

    refs = (x_ref, w0, b0, w1, b1, ..., out_ref, h1_ref, ..., h_{L-1}_ref)

    The running activation `h` stays in vregs/VMEM between layers; only the
    tensors the module actually returns (`out` and each `midd` entry) are
    written back to HBM.
    """
    x_ref = refs[0]
    wb_refs = refs[1:1 + 2 * num_layers]
    out_refs = refs[1 + 2 * num_layers:]
    out_ref = out_refs[0]
    hid_refs = out_refs[1:]

    h = x_ref[...]
    for l in range(num_layers):
        w_ref = wb_refs[2 * l]
        b_ref = wb_refs[2 * l + 1]
        # MXU matmul with f32 accumulation; bias/ReLU epilogue in f32.
        y = jnp.dot(h.astype(w_ref.dtype), w_ref[...],
                    preferred_element_type=jnp.float32)
        y = y + b_ref[...]                      # (1, N) broadcasts over rows
        is_last = (l == num_layers - 1)
        if (not is_last) or relu_last:
            y = jnp.maximum(y, 0.0)
        if is_last:
            out_ref[...] = y.astype(out_ref.dtype)
        else:
            hid_refs[l][...] = y.astype(hid_refs[l].dtype)
            h = y                               # stays on-chip for next layer


def mlp_forward(params, x, *, tm=None, compute_dtype=None):
    """Fused MLP forward.  Returns (out, midd) matching MLP.forward."""
    num_layers = len(params)
    M, input_dim = x.shape
    output_dim = params[-1][0].shape[1]
    hidden_dims = [w.shape[1] for (w, _) in params[:-1]]

    # ---- batch (M) tiling: one "parallel" grid axis (megacore on v7x) ----
    if tm is None:
        tm = 256 if M >= 256 else _round_up(max(M, 1), 8)
    Mp = _round_up(M, tm)
    x_in = x if Mp == M else jnp.pad(x, ((0, Mp - M), (0, 0)))

    # Optional low-precision matmul inputs (bf16 recommended on v6e/v7x).
    if compute_dtype is not None:
        x_in = x_in.astype(compute_dtype)
        wb = [(w.astype(compute_dtype), b.astype(jnp.float32)) for (w, b) in params]
    else:
        wb = list(params)

    grid = (Mp // tm,)

    # ---- specs / flattened inputs ----
    in_specs = [pl.BlockSpec((tm, input_dim), lambda i: (i, 0))]
    flat_inputs = [x_in]
    for (w, b) in wb:
        K, N = w.shape
        in_specs.append(pl.BlockSpec((K, N), lambda i: (0, 0)))   # resident
        in_specs.append(pl.BlockSpec((1, N), lambda i: (0, 0)))   # resident
        flat_inputs.append(w)
        flat_inputs.append(b.reshape(1, N))

    out_shapes = [jax.ShapeDtypeStruct((Mp, output_dim), x.dtype)]
    out_specs = [pl.BlockSpec((tm, output_dim), lambda i: (i, 0))]
    for hd in hidden_dims:
        out_shapes.append(jax.ShapeDtypeStruct((Mp, hd), x.dtype))
        out_specs.append(pl.BlockSpec((tm, hd), lambda i: (i, 0)))

    # ---- VMEM budget: weights resident once + double-buffered M tiles ----
    act_itemsize = jnp.dtype(compute_dtype).itemsize if compute_dtype else 4
    weight_bytes = sum(w.size * w.dtype.itemsize + 4 * b.size for (w, b) in wb)
    act_bytes = (tm * input_dim * act_itemsize
                 + tm * output_dim * 4
                 + sum(tm * hd * 4 for hd in hidden_dims))
    est = 2 * weight_bytes + 4 * act_bytes        # generous double-buffer headroom
    vmem_limit = int(min(64 * 2 ** 20, max(8 * 2 ** 20, est)))

    kernel = functools.partial(_fused_mlp_kernel,
                               num_layers=num_layers,
                               relu_last=(num_layers == 1))

    outs = pl.pallas_call(
        kernel,
        out_shape=tuple(out_shapes),
        grid=grid,
        in_specs=in_specs,
        out_specs=tuple(out_specs),
        compiler_params=pltpu.CompilerParams(
            dimension_semantics=("parallel",),
            vmem_limit_bytes=vmem_limit),
    )(*flat_inputs)

    out = outs[0][:M]
    hiddens = [o[:M] for o in outs[1:]]
    midd = [x] + hiddens                          # matches PyTorch midd list
    return out, midd


def init_mlp_params(key, num_layers, input_dim, hidden_dim, output_dim):
    """Deterministic init mimicking nn.Linear U(-1/sqrt(fan_in), 1/sqrt(fan_in)).

    Weights stored (in_dim, out_dim)."""
    if num_layers < 1:
        raise ValueError("number of layers should be positive!")
    if num_layers == 1:
        dims = [(input_dim, output_dim)]
    else:
        dims = [(input_dim, hidden_dim)]
        dims += [(hidden_dim, hidden_dim)] * (num_layers - 2)
        dims += [(hidden_dim, output_dim)]
    params = []
    for (fan_in, fan_out) in dims:
        key, kw, kb = jax.random.split(key, 3)
        bound = 1.0 / jnp.sqrt(jnp.float32(fan_in))
        w = jax.random.uniform(kw, (fan_in, fan_out), jnp.float32, -bound, bound)
        b = jax.random.uniform(kb, (fan_out,), jnp.float32, -bound, bound)
        params.append((w, b))
    return params


if __name__ == "__main__":
    num_layers = 3
    input_dim = 16
    hidden_dim = 32
    output_dim = 8
    batch = 8

    key = jax.random.PRNGKey(0)
    key, kx = jax.random.split(key)
    x = jax.random.normal(kx, (batch, input_dim), jnp.float32)

    # ---- multi-layer path ----
    params = init_mlp_params(key, num_layers, input_dim, hidden_dim, output_dim)
    out, midd = mlp_forward(params, x)
    out = jax.block_until_ready(out)
    for m in midd:
        jax.block_until_ready(m)

    def ref_forward(params, x):
        h = x
        mids = [x]
        for (w, b) in params[:-1]:
            h = jnp.maximum(h @ w + b, 0.0)
            mids.append(h)
        w, b = params[-1]
        return h @ w + b, mids

    ref_out, ref_midd = ref_forward(params, x)
    assert out.shape == (batch, output_dim)
    assert jnp.allclose(out, ref_out, atol=1e-5, rtol=1e-5)
    assert len(midd) == num_layers
    for a, b_ in zip(midd, ref_midd):
        assert jnp.allclose(a, b_, atol=1e-5, rtol=1e-5)

    # ---- single-layer (linear_or_not) path ----
    params1 = init_mlp_params(key, 1, input_dim, hidden_dim, output_dim)
    out1, midd1 = mlp_forward(params1, x)
    out1 = jax.block_until_ready(out1)
    ref1 = jnp.maximum(x @ params1[0][0] + params1[0][1], 0.0)
    assert jnp.allclose(out1, ref1, atol=1e-5, rtol=1e-5)
    assert len(midd1) == 1 and jnp.allclose(midd1[0], x)

    print("KERNEL_OK")
</pallas_src>

<mosaic_0001>
module attributes {stable_mosaic.version = 11 : i64} {
  func.func @_fused_mlp_kernel(%arg0: i32, %arg1: memref<8x16xf32, #tpu.memory_space<vmem>>, %arg2: memref<16x32xf32, #tpu.memory_space<vmem>>, %arg3: memref<1x32xf32, #tpu.memory_space<vmem>>, %arg4: memref<32x32xf32, #tpu.memory_space<vmem>>, %arg5: memref<1x32xf32, #tpu.memory_space<vmem>>, %arg6: memref<32x8xf32, #tpu.memory_space<vmem>>, %arg7: memref<1x8xf32, #tpu.memory_space<vmem>>, %arg8: memref<8x8xf32, #tpu.memory_space<vmem>>, %arg9: memref<8x32xf32, #tpu.memory_space<vmem>>, %arg10: memref<8x32xf32, #tpu.memory_space<vmem>>) attributes {dimension_semantics = [#tpu.dimension_semantics<parallel>], iteration_bounds = array<i64: 1>, scalar_prefetch = 0 : i64, scratch_operands = 0 : i64, tpu.core_type = #tpu.core_type<tc>, window_params = [{transform_indices = @transform_0, window_bounds = array<i64: 8, 16>}, {pipeline_mode = #tpu.pipeline_mode<synchronous>, transform_indices = @transform_1, window_bounds = array<i64: 16, 32>}, {pipeline_mode = #tpu.pipeline_mode<synchronous>, transform_indices = @transform_2, window_bounds = array<i64: 1, 32>}, {pipeline_mode = #tpu.pipeline_mode<synchronous>, transform_indices = @transform_3, window_bounds = array<i64: 32, 32>}, {pipeline_mode = #tpu.pipeline_mode<synchronous>, transform_indices = @transform_4, window_bounds = array<i64: 1, 32>}, {pipeline_mode = #tpu.pipeline_mode<synchronous>, transform_indices = @transform_5, window_bounds = array<i64: 32, 8>}, {pipeline_mode = #tpu.pipeline_mode<synchronous>, transform_indices = @transform_6, window_bounds = array<i64: 1, 8>}, {transform_indices = @transform_7, window_bounds = array<i64: 8, 8>}, {transform_indices = @transform_8, window_bounds = array<i64: 8, 32>}, {transform_indices = @transform_9, window_bounds = array<i64: 8, 32>}]} {
    %c0 = arith.constant 0 : index
    %c0_0 = arith.constant 0 : index
    %0 = vector.load %arg1[%c0, %c0_0] : memref<8x16xf32, #tpu.memory_space<vmem>>, vector<8x16xf32>
    %c0_1 = arith.constant 0 : index
    %c0_2 = arith.constant 0 : index
    %1 = vector.load %arg2[%c0_1, %c0_2] : memref<16x32xf32, #tpu.memory_space<vmem>>, vector<16x32xf32>
    %cst = arith.constant dense<0.000000e+00> : vector<8x32xf32>
    %2 = tpu.matmul %0, %1, %cst {dimension_numbers = #tpu.dot_dimension_numbers<[1], [0], [0], [1], [0, 0, 1, 1], [], []>} : vector<8x16xf32>, vector<16x32xf32>, vector<8x32xf32> -> vector<8x32xf32>
    %c0_3 = arith.constant 0 : index
    %c0_4 = arith.constant 0 : index
    %3 = vector.load %arg3[%c0_3, %c0_4] : memref<1x32xf32, #tpu.memory_space<vmem>>, vector<1x32xf32>
    %4 = vector.broadcast %3 : vector<1x32xf32> to vector<8x32xf32>
    %5 = arith.addf %2, %4 : vector<8x32xf32>
    %cst_5 = arith.constant 0.000000e+00 : f32
    %6 = vector.broadcast %cst_5 : f32 to vector<8x32xf32>
    %7 = arith.maximumf %5, %6 : vector<8x32xf32>
    %c0_6 = arith.constant 0 : index
    %c0_7 = arith.constant 0 : index
    %8 = vector.load %arg9[%c0_6, %c0_7] : memref<8x32xf32, #tpu.memory_space<vmem>>, vector<8x32xf32>
    tpu.vector_store %arg9[%c0_6, %c0_7], %7 {strides = array<i32>} : memref<8x32xf32, #tpu.memory_space<vmem>>, vector<8x32xf32>,
    %c0_8 = arith.constant 0 : index
    %c0_9 = arith.constant 0 : index
    %9 = vector.load %arg4[%c0_8, %c0_9] : memref<32x32xf32, #tpu.memory_space<vmem>>, vector<32x32xf32>
    %cst_10 = arith.constant dense<0.000000e+00> : vector<8x32xf32>
    %10 = tpu.matmul %7, %9, %cst_10 {dimension_numbers = #tpu.dot_dimension_numbers<[1], [0], [0], [1], [0, 0, 1, 1], [], []>} : vector<8x32xf32>, vector<32x32xf32>, vector<8x32xf32> -> vector<8x32xf32>
    %c0_11 = arith.constant 0 : index
    %c0_12 = arith.constant 0 : index
    %11 = vector.load %arg5[%c0_11, %c0_12] : memref<1x32xf32, #tpu.memory_space<vmem>>, vector<1x32xf32>
    %12 = vector.broadcast %11 : vector<1x32xf32> to vector<8x32xf32>
    %13 = arith.addf %10, %12 : vector<8x32xf32>
    %cst_13 = arith.constant 0.000000e+00 : f32
    %14 = vector.broadcast %cst_13 : f32 to vector<8x32xf32>
    %15 = arith.maximumf %13, %14 : vector<8x32xf32>
    %c0_14 = arith.constant 0 : index
    %c0_15 = arith.constant 0 : index
    %16 = vector.load %arg10[%c0_14, %c0_15] : memref<8x32xf32, #tpu.memory_space<vmem>>, vector<8x32xf32>
    tpu.vector_store %arg10[%c0_14, %c0_15], %15 {strides = array<i32>} : memref<8x32xf32, #tpu.memory_space<vmem>>, vector<8x32xf32>,
    %c0_16 = arith.constant 0 : index
    %c0_17 = arith.constant 0 : index
    %17 = vector.load %arg6[%c0_16, %c0_17] : memref<32x8xf32, #tpu.memory_space<vmem>>, vector<32x8xf32>
    %cst_18 = arith.constant dense<0.000000e+00> : vector<8x8xf32>
    %18 = tpu.matmul %15, %17, %cst_18 {dimension_numbers = #tpu.dot_dimension_numbers<[1], [0], [0], [1], [0, 0, 1, 1], [], []>} : vector<8x32xf32>, vector<32x8xf32>, vector<8x8xf32> -> vector<8x8xf32>
    %c0_19 = arith.constant 0 : index
    %c0_20 = arith.constant 0 : index
    %19 = vector.load %arg7[%c0_19, %c0_20] : memref<1x8xf32, #tpu.memory_space<vmem>>, vector<1x8xf32>
    %20 = vector.broadcast %19 : vector<1x8xf32> to vector<8x8xf32>
    %21 = arith.addf %18, %20 : vector<8x8xf32>
    %c0_21 = arith.constant 0 : index
    %c0_22 = arith.constant 0 : index
    %22 = vector.load %arg8[%c0_21, %c0_22] : memref<8x8xf32, #tpu.memory_space<vmem>>, vector<8x8xf32>
    tpu.vector_store %arg8[%c0_21, %c0_22], %21 {strides = array<i32>} : memref<8x8xf32, #tpu.memory_space<vmem>>, vector<8x8xf32>,
    return
  }
  func.func @transform_0(%arg0: i32) -> (i32, i32) {
    %c0_i32 = arith.constant 0 : i32
    %c0_i32_0 = arith.constant 0 : i32
    return %arg0, %c0_i32 : i32, i32
  }
  func.func @transform_1(%arg0: i32) -> (i32, i32) {
    %c0_i32 = arith.constant 0 : i32
    %c0_i32_0 = arith.constant 0 : i32
    %c0_i32_1 = arith.constant 0 : i32
    return %c0_i32, %c0_i32_0 : i32, i32
  }
  func.func @transform_2(%arg0: i32) -> (i32, i32) {
    %c0_i32 = arith.constant 0 : i32
    %c0_i32_0 = arith.constant 0 : i32
    %c0_i32_1 = arith.constant 0 : i32
    return %c0_i32, %c0_i32_0 : i32, i32
  }
  func.func @transform_3(%arg0: i32) -> (i32, i32) {
    %c0_i32 = arith.constant 0 : i32
    %c0_i32_0 = arith.constant 0 : i32
    %c0_i32_1 = arith.constant 0 : i32
    return %c0_i32, %c0_i32_0 : i32, i32
  }
  func.func @transform_4(%arg0: i32) -> (i32, i32) {
    %c0_i32 = arith.constant 0 : i32
    %c0_i32_0 = arith.constant 0 : i32
    %c0_i32_1 = arith.constant 0 : i32
    return %c0_i32, %c0_i32_0 : i32, i32
  }
  func.func @transform_5(%arg0: i32) -> (i32, i32) {
    %c0_i32 = arith.constant 0 : i32
    %c0_i32_0 = arith.constant 0 : i32
    %c0_i32_1 = arith.constant 0 : i32
    return %c0_i32, %c0_i32_0 : i32, i32
  }
  func.func @transform_6(%arg0: i32) -> (i32, i32) {
    %c0_i32 = arith.constant 0 : i32
    %c0_i32_0 = arith.constant 0 : i32
    %c0_i32_1 = arith.constant 0 : i32
    return %c0_i32, %c0_i32_0 : i32, i32
  }
  func.func @transform_7(%arg0: i32) -> (i32, i32) {
    %c0_i32 = arith.constant 0 : i32
    %c0_i32_0 = arith.constant 0 : i32
    return %arg0, %c0_i32 : i32, i32
  }
  func.func @transform_8(%arg0: i32) -> (i32, i32) {
    %c0_i32 = arith.constant 0 : i32
    %c0_i32_0 = arith.constant 0 : i32
    return %arg0, %c0_i32 : i32, i32
  }
  func.func @transform_9(%arg0: i32) -> (i32, i32) {
    %c0_i32 = arith.constant 0 : i32
    %c0_i32_0 = arith.constant 0 : i32
    return %arg0, %c0_i32 : i32, i32
  }
}

</mosaic_0001>

<llo_original>
// kernel: tpu_custom_call.1
$region0: #{tpu_custom_call.1}
  #allocation0 [shape = 'u32[]', space=smem, size = 0x4, offset = 0x4, fixed_abs, tag = 'smem constant byte address 0x4 - core index']
  #allocation1 [shape = 'u32[72,128]{1,0:T(1,128)}', space=vmem, size = 0x9000, scoped, tag = 'internal scratch']
  %s0 = inlined_call_operand.vmem [shape: f32[8,16], index: 0, kind: input, shape index: {}]
  %s1 = inlined_call_operand.hbm [shape: f32[16,32], index: 1, kind: input, shape index: {}]
  %s2 = inlined_call_operand.vmem [shape: f32[1,32], index: 2, kind: input, shape index: {}]
  %s3 = inlined_call_operand.vmem [shape: f32[32,32], index: 3, kind: input, shape index: {}]
  %s4 = inlined_call_operand.vmem [shape: f32[1,32], index: 4, kind: input, shape index: {}]
  %s5 = inlined_call_operand.vmem [shape: f32[32,8], index: 5, kind: input, shape index: {}]
  %s6 = inlined_call_operand.vmem [shape: f32[1,8], index: 6, kind: input, shape index: {}]
  %s7 = inlined_call_operand.hbm [shape: f32[8,8], index: 7, kind: output, shape index: {0}]
  %s8 = inlined_call_operand.hbm [shape: f32[8,32], index: 8, kind: output, shape index: {1}]
  %s9 = inlined_call_operand.hbm [shape: f32[8,32], index: 9, kind: output, shape index: {2}]
  %10 = xla_tuple %s7, %s8, %s9
  %s11 = sld [smem:[#allocation0]]
  $region58: #{tpu_custom_call.1} parent=0
    _
  %s13 = ssub.s32 1, %s11
  %s14 = scalar_select 0, %s13, %s11
  $region1: #{tpu_custom_call.1} parent=0
    #allocation2 [shape = 'u8[8192]{0}', space=vmem, size = 0x2000, scoped, tag = 'input window, operand 1, single buffered']
    #allocation3 [shape = 's32[1]{0}', space=sflag, size = 0x4, scoped, tag = 'scoped memory for tpu_custom_call.1']
    #allocation4 [shape = 's32[1]{0}', space=sflag, size = 0x4, scoped, tag = 'scoped memory for tpu_custom_call.1']
    #allocation5 [shape = 'u8[4096]{0}', space=vmem, size = 0x1000, scoped, tag = 'output window, operand 0, single buffered']
    #allocation6 [shape = 'u8[4096]{0}', space=vmem, size = 0x1000, scoped, tag = 'output window, operand 1, single buffered']
    #allocation7 [shape = 's32[1]{0}', space=sflag, size = 0x4, scoped, tag = 'scoped memory for tpu_custom_call.1']
    #allocation8 [shape = 'u8[4096]{0}', space=vmem, size = 0x1000, scoped, tag = 'output window, operand 2, single buffered']
    %15 = vsyncpa [#allocation3], 0
    %16 = vsyncpa [#allocation4], 0
    %17 = vsyncpa [#allocation7], 0
    // Predicated region
    $region2: #{tpu_custom_call.1} parent=1 // pred_check
      _
    $region3: #{tpu_custom_call.1} parent=1 // pred_check_branch
      %19 = sbr.rel (0) target = $region5
    $region4: #{tpu_custom_call.1} parent=1 // pred_region
      _
    $region5: #{tpu_custom_call.1} parent=1 // pred_fallthru
      _
    // Predicated region
    $region6: #{tpu_custom_call.1} parent=1 // pred_check
      _
    $region7: #{tpu_custom_call.1} parent=1 // pred_check_branch
      %21 = sbr.rel (0) target = $region9
    $region8: #{tpu_custom_call.1} parent=1 // pred_region
      %23 = vsyncadd [#allocation3], 0
      %s24 = sshll.u32 %s1, 4
      %s25 = int_to_ptr.hbm [resolvable:$true] %s24
      %s26 = sshll.u32 [#allocation2], 4
      %s27 = int_to_ptr.vmem [resolvable:$true] %s26
      %32 = dma.hbm_to_vmem [thread:$0]  %s25, 256, %s27, [#allocation3], 128, 128, 8
    $region9: #{tpu_custom_call.1} parent=1 // pred_fallthru
      _
    // Predicated region
    $region10: #{tpu_custom_call.1} parent=1 // pred_check
      _
    $region11: #{tpu_custom_call.1} parent=1 // pred_check_branch
      %34 = sbr.rel (0) target = $region13
    $region12: #{tpu_custom_call.1} parent=1 // pred_region
      _
    $region13: #{tpu_custom_call.1} parent=1 // pred_fallthru
      _
    // Predicated region
    $region14: #{tpu_custom_call.1} parent=1 // pred_check
      _
    $region15: #{tpu_custom_call.1} parent=1 // pred_check_branch
      %36 = sbr.rel (0) target = $region17
    $region16: #{tpu_custom_call.1} parent=1 // pred_region
      _
    $region17: #{tpu_custom_call.1} parent=1 // pred_fallthru
      _
    // Predicated region
    $region18: #{tpu_custom_call.1} parent=1 // pred_check
      _
    $region19: #{tpu_custom_call.1} parent=1 // pred_check_branch
      %38 = sbr.rel (0) target = $region21
    $region20: #{tpu_custom_call.1} parent=1 // pred_region
      _
    $region21: #{tpu_custom_call.1} parent=1 // pred_fallthru
      _
    // Predicated region
    $region22: #{tpu_custom_call.1} parent=1 // pred_check
      _
    $region23: #{tpu_custom_call.1} parent=1 // pred_check_branch
      %40 = sbr.rel (0) target = $region25
    $region24: #{tpu_custom_call.1} parent=1 // pred_region
      _
    $region25: #{tpu_custom_call.1} parent=1 // pred_fallthru
      _
    // Predicated region
    $region26: #{tpu_custom_call.1} parent=1 // pred_check
      _
    $region27: #{tpu_custom_call.1} parent=1 // pred_check_branch
      %42 = sbr.rel (0) target = $region29
    $region28: #{tpu_custom_call.1} parent=1 // pred_region
      _
    $region29: #{tpu_custom_call.1} parent=1 // pred_fallthru
      _
    // Predicated region
    $region30: #{tpu_custom_call.1} parent=1 // pred_check
      _
    $region31: #{tpu_custom_call.1} parent=1 // pred_check_branch
      %44 = sbr.rel (0) target = $region33
    $region32: #{tpu_custom_call.1} parent=1 // pred_region
      %46 = dma.done [#allocation3], 256
    $region33: #{tpu_custom_call.1} parent=1 // pred_fallthru
      _
    %v47 = vld [vmem:[%s0] sm:$0xff]
    %v48 = vld [vmem:[#allocation2] sm:$0xff]
    %v49 = vld [vmem:[#allocation2 + $0x8] sm:$0xff]
    %v50 = vld [vmem:[%s2] sm:$0x1]
    %v52 = vperm.slane %v50, 0
    %vm54 = vcmask 130048
    %v56 = vsel %vm54, %v47, 0
    %58 = vmatpush.msra.mxu0 0.0
    %59 = vmatpush.msra.mxu0 0.0
    %60 = vmatpush.msra.mxu0 0.0
    %61 = vmatpush.msra.mxu0 0.0
    %62 = vmatpush.msra.mxu0 0.0
    %63 = vmatpush.msra.mxu0 0.0
    %64 = vmatpush.msra.mxu0 0.0
    %65 = vmatpush.msra.mxu0 0.0
    %66 = vmatpush.msra.mxu0 0.0
    %67 = vmatpush.msra.mxu0 0.0
    %68 = vmatpush.msra.mxu0 0.0
    %69 = vmatpush.msra.mxu0 0.0
    %70 = vmatpush.msra.mxu0 0.0
    %71 = vmatpush.msra.mxu0 0.0
    %72 = vmatpush.msra.mxu0 %v49
    %73 = vmatpush.msra.mxu0 %v48
    %74 = vmatmul.f32.gmra.mxu0 %v56
    %v75 = vpop.f32.mrf.mxu0
    %v76 = vadd.f32 %v52, %v75
    %77 = vdwg.mxu0
    %v78 = vmax.f32 %v76, 0.0
    %vm79 = vcmask 261120
    %80 = vst.msk [vmem:[#allocation6] sm:$0xff] %vm79, %v78
    %v81 = vld [vmem:[%s3] sm:$0xff]
    %v82 = vld [vmem:[%s3 + $0x8] sm:$0xff]
    %v83 = vld [vmem:[%s3 + $0x10] sm:$0xff]
    %v84 = vld [vmem:[%s3 + $0x18] sm:$0xff]
    %v85 = vld [vmem:[%s4] sm:$0x1]
    %v87 = vperm.slane %v85, 0
    %v90 = vsel %vm79, %v78, 0
    %92 = vmatpush.msra.mxu0 0.0
    %93 = vmatpush.msra.mxu0 0.0
    %94 = vmatpush.msra.mxu0 0.0
    %95 = vmatpush.msra.mxu0 0.0
    %96 = vmatpush.msra.mxu0 0.0
    %97 = vmatpush.msra.mxu0 0.0
    %98 = vmatpush.msra.mxu0 0.0
    %99 = vmatpush.msra.mxu0 0.0
    %100 = vmatpush.msra.mxu0 0.0
    %101 = vmatpush.msra.mxu0 0.0
    %102 = vmatpush.msra.mxu0 0.0
    %103 = vmatpush.msra.mxu0 0.0
    %104 = vmatpush.msra.mxu0 %v84
    %105 = vmatpush.msra.mxu0 %v83
    %106 = vmatpush.msra.mxu0 %v82
    %107 = vmatpush.msra.mxu0 %v81
    %108 = vmatmul.f32.gmra.mxu0 %v90
    %v109 = vpop.f32.mrf.mxu0
    %v110 = vadd.f32 %v87, %v109
    %111 = vdwg.mxu0
    %v112 = vmax.f32 %v110, 0.0
    %113 = vst.msk [vmem:[#allocation8] sm:$0xff] %vm79, %v112
    %v114 = vld [vmem:[%s5] sm:$0xff]
    %v115 = vld [vmem:[%s5 + $0x8] sm:$0xff]
    %v116 = vld [vmem:[%s5 + $0x10] sm:$0xff]
    %v117 = vld [vmem:[%s5 + $0x18] sm:$0xff]
    %v118 = vld [vmem:[%s6] sm:$0x1]
    %v120 = vperm.slane %v118, 0
    %v123 = vsel %vm79, %v112, 0
    %125 = vmatpush.msra.mxu0 0.0
    %126 = vmatpush.msra.mxu0 0.0
    %127 = vmatpush.msra.mxu0 0.0
    %128 = vmatpush.msra.mxu0 0.0
    %129 = vmatpush.msra.mxu0 0.0
    %130 = vmatpush.msra.mxu0 0.0
    %131 = vmatpush.msra.mxu0 0.0
    %132 = vmatpush.msra.mxu0 0.0
    %133 = vmatpush.msra.mxu0 0.0
    %134 = vmatpush.msra.mxu0 0.0
    %135 = vmatpush.msra.mxu0 0.0
    %136 = vmatpush.msra.mxu0 0.0
    %137 = vmatpush.msra.mxu0 %v117
    %138 = vmatpush.msra.mxu0 %v116
    %139 = vmatpush.msra.mxu0 %v115
    %140 = vmatpush.msra.mxu0 %v114
    %141 = vmatmul.f32.gmra.mxu0 %v123
    %v142 = vpop.f32.mrf.mxu0
    %v143 = vadd.f32 %v120, %v142
    %144 = vdwg.mxu0
    %vm145 = vcmask 64512
    %146 = vst.msk [vmem:[#allocation5] sm:$0xff] %vm145, %v143
    // Predicated region
    $region34: #{tpu_custom_call.1} parent=1 // pred_check
      _
    $region35: #{tpu_custom_call.1} parent=1 // pred_check_branch
      %148 = sbr.rel (0) target = $region37
    $region36: #{tpu_custom_call.1} parent=1 // pred_region
      %150 = vsyncadd [#allocation4], 0
      %s152 = sshll.u32 [#allocation5], 4
      %s153 = int_to_ptr.vmem [resolvable:$true] %s152
      %s154 = sshll.u32 %s7, 4
      %s155 = int_to_ptr.hbm [resolvable:$true] %s154
      %157 = dma.vmem_to_hbm [thread:$0]  %s153, 128, %s155, [#allocation4]
    $region37: #{tpu_custom_call.1} parent=1 // pred_fallthru
      _
    // Predicated region
    $region38: #{tpu_custom_call.1} parent=1 // pred_check
      _
    $region39: #{tpu_custom_call.1} parent=1 // pred_check_branch
      %159 = sbr.rel (0) target = $region41
    $region40: #{tpu_custom_call.1} parent=1 // pred_region
      %161 = vsyncadd [#allocation7], 0
      %s163 = sshll.u32 [#allocation6], 4
      %s164 = int_to_ptr.vmem [resolvable:$true] %s163
      %s165 = sshll.u32 %s8, 4
      %s166 = int_to_ptr.hbm [resolvable:$true] %s165
      %168 = dma.vmem_to_hbm [thread:$0]  %s164, 128, %s166, [#allocation7]
    $region41: #{tpu_custom_call.1} parent=1 // pred_fallthru
      _
    // Predicated region
    $region42: #{tpu_custom_call.1} parent=1 // pred_check
      _
    $region43: #{tpu_custom_call.1} parent=1 // pred_check_branch
      %170 = sbr.rel (0) target = $region45
    $region44: #{tpu_custom_call.1} parent=1 // pred_region
      %172 = vsyncadd [#allocation7], 0
      %s174 = sshll.u32 [#allocation8], 4
      %s175 = int_to_ptr.vmem [resolvable:$true] %s174
      %s176 = sshll.u32 %s9, 4
      %s177 = int_to_ptr.hbm [resolvable:$true] %s176
      %179 = dma.vmem_to_hbm [thread:$0]  %s175, 128, %s177, [#allocation7]
    $region45: #{tpu_custom_call.1} parent=1 // pred_fallthru
      _
    // Predicated region
    $region46: #{tpu_custom_call.1} parent=1 // pred_check
      _
    $region47: #{tpu_custom_call.1} parent=1 // pred_check_branch
      %181 = sbr.rel (0) target = $region49
    $region48: #{tpu_custom_call.1} parent=1 // pred_region
      %183 = dma.done [#allocation4], 128
    $region49: #{tpu_custom_call.1} parent=1 // pred_fallthru
      _
    // Predicated region
    $region50: #{tpu_custom_call.1} parent=1 // pred_check
      _
    $region51: #{tpu_custom_call.1} parent=1 // pred_check_branch
      %185 = sbr.rel (0) target = $region53
    $region52: #{tpu_custom_call.1} parent=1 // pred_region
      %187 = dma.done [#allocation7], 128
    $region53: #{tpu_custom_call.1} parent=1 // pred_fallthru
      _
    // Predicated region
    $region54: #{tpu_custom_call.1} parent=1 // pred_check
      _
    $region55: #{tpu_custom_call.1} parent=1 // pred_check_branch
      %189 = sbr.rel (0) target = $region57
    $region56: #{tpu_custom_call.1} parent=1 // pred_region
      %191 = dma.done [#allocation7], 128
    $region57: #{tpu_custom_call.1} parent=1 // pred_fallthru
      _
    %192 = vsyncpa [#allocation3], 1
    %193 = vsyncpa [#allocation4], 1
    %194 = vsyncpa [#allocation7], 1

</llo_original>
